<compile_context>
chip_gen: v5e
topology: v5e:2x2
jax: 0.10.0
libtpu: 0.0.40
codegen_flags: <defaults>
</compile_context>

<pallas_src>
from functools import partial

import jax
import jax.numpy as jnp
from jax.experimental import pallas as pl
from jax.experimental.pallas import tpu as pltpu


def _round_up(x: int, m: int) -> int:
    return ((x + m - 1) // m) * m


def _scale_kernel(x_ref, w_ref, b_ref, o_ref, *, min_a: float, max_a: float):
    # MXU matmul with f32 accumulation; bias/sigmoid/affine in f32 (VPU/EUP).
    y = jnp.dot(x_ref[...], w_ref[...], preferred_element_type=jnp.float32)
    y = y + b_ref[...]                              # (tn, C) + (1, C) broadcast
    o_ref[...] = (jax.nn.sigmoid(y) * max_a + min_a).astype(o_ref.dtype)


def scale_from_embedding(part_shape_features: jax.Array,
                         weight: jax.Array,
                         bias: jax.Array,
                         *,
                         min_a: float = 0.005,
                         max_a: float = 0.5,
                         vmem_budget_bytes: int = 8 * 1024 * 1024,
                         use_pallas_min_rows: int = 2048) -> jax.Array:
    """JAX/Pallas equivalent of ScaleFromEmbedding.forward.

    part_shape_features: (B, M, D) float32 or bfloat16
    weight:              (D, 3)    (PyTorch stores (3, D); pass W.T)
    bias:                (3,)
    returns scale:       (B, M, 3) float32
    """
    B, M, D = part_shape_features.shape
    N = B * M
    in_dtype = part_shape_features.dtype
    itemsize = jnp.dtype(in_dtype).itemsize
    sub = max(8, 32 // itemsize)          # sublane multiple: 8 f32 / 16 bf16 / 32 int8

    # Tiny problems: plain XLA fusion beats any pallas_call launch.
    if N < use_pallas_min_rows:
        logits = (jnp.dot(part_shape_features.reshape(N, D).astype(jnp.float32),
                          weight.astype(jnp.float32))
                  + bias.reshape(1, 3).astype(jnp.float32))
        return (jax.nn.sigmoid(logits) * max_a + min_a).reshape(B, M, 3)

    x2d = part_shape_features.reshape(N, D)
    w = weight.astype(in_dtype)                      # matmul in activation dtype
    b_f32 = bias.reshape(1, 3).astype(jnp.float32)   # elementwise tail in f32

    # ---- Lane packing: P rows per 128-lane packed row (free row-major reshape). ----
    pack = 0 < D <= 128 and (128 % D == 0)
    P = (128 // D) if pack else 1
    lanes = P * D
    out_cols = 3 * P

    rows = pl.cdiv(N, P)                    # packed row count before padding
    rows_pad = _round_up(rows, sub)
    n_pad = rows_pad * P
    if n_pad != N:
        # Zero-pad trailing rows (each row independent; sliced off afterwards).
        x2d = jnp.pad(x2d, ((0, n_pad - N), (0, 0)))
    xp = x2d.reshape(rows_pad, lanes)       # no-copy reshape when no padding

    if P > 1:
        # Block-diagonal weight (P*D, 3*P): input cols [p*D:(p+1)*D] map to
        # output cols [p*3:(p+1)*3].  Built once at trace time (P is small).
        wbig = jnp.zeros((lanes, out_cols), dtype=w.dtype)
        for p in range(P):
            wbig = wbig.at[p * D:(p + 1) * D, p * 3:(p + 1) * 3].set(w)
        bbig = jnp.tile(b_f32, (1, P))      # (1, 3*P)
    else:
        wbig, bbig = w, b_f32

    # ---- VMEM-budgeted row tile (streamed, double-buffered). ----
    bytes_per_row = lanes * itemsize
    budget_rows = max(sub, (vmem_budget_bytes // bytes_per_row) // sub * sub)
    tn = min(budget_rows, rows_pad)
    # v7x megacore: give the "parallel" row axis at least 2 grid steps when the
    # problem is large enough to matter.
    if tn >= rows_pad and rows_pad >= 4 * sub and rows_pad > 4096:
        tn = _round_up(pl.cdiv(rows_pad, 2), sub)
    grid = (pl.cdiv(rows_pad, tn),)

    cost = pl.CostEstimate(
        flops=2 * N * D * 3 + 4 * N * 3,
        transcendentals=3 * N,
        bytes_accessed=N * D * itemsize + N * 3 * 4 + lanes * out_cols * itemsize,
    )

    kernel = partial(_scale_kernel, min_a=min_a, max_a=max_a)

    out_packed = pl.pallas_call(
        kernel,
        out_shape=jax.ShapeDtypeStruct((rows_pad, out_cols), jnp.float32),
        grid=grid,
        in_specs=[
            pl.BlockSpec((tn, lanes), lambda i: (i, 0)),      # streamed x
            pl.BlockSpec((lanes, out_cols), lambda i: (0, 0)),  # resident weight
            pl.BlockSpec((1, out_cols), lambda i: (0, 0)),      # resident bias
        ],
        out_specs=pl.BlockSpec((tn, out_cols), lambda i: (i, 0)),
        compiler_params=pltpu.CompilerParams(
            dimension_semantics=("parallel",),   # shard rows across TCs (v7x)
        ),
        cost_estimate=cost,
    )(xp, wbig, bbig)

    # Unpack: (rows_pad, P, 3) -> (rows_pad*P, 3) -> drop padding -> (B, M, 3).
    out2d = out_packed.reshape(rows_pad * P, 3)[:N]
    return out2d.reshape(B, M, 3)


def scale_from_embedding_ref(x, w_pt, b_pt, *, min_a, max_a):
    """Pure-JAX reference (PyTorch weight layout: (3, D))."""
    logits = jnp.einsum("bmd,od->bmo", x.astype(jnp.float32),
                        w_pt.astype(jnp.float32)) + b_pt.astype(jnp.float32)
    return jax.nn.sigmoid(logits) * max_a + min_a


if __name__ == "__main__":
    key = jax.random.PRNGKey(0)
    k_x, k_w, k_b, k_x2 = jax.random.split(key, 4)

    min_a, max_a = 0.005, 0.5
    D = 32                                   # in_dims

    # nn.Linear(D, 3): weight (3, D), bias (3,).  Kernel takes weight.T = (D, 3).
    w_pt = jax.random.normal(k_w, (3, D), dtype=jnp.float32) * (1.0 / jnp.sqrt(D))
    b_pt = jax.random.normal(k_b, (3,), dtype=jnp.float32) * 0.01

    run = partial(scale_from_embedding, min_a=min_a, max_a=max_a,
                  use_pallas_min_rows=0)     # force the Pallas path in tests

    # --- 1) Small shape (module-typical toy size), f32, single-tile grid. ---
    B, M = 2, 8
    x_small = jax.random.normal(k_x, (B, M, D), dtype=jnp.float32)
    out_small = jax.block_until_ready(run(x_small, w_pt.T, b_pt))
    ref_small = scale_from_embedding_ref(x_small, w_pt, b_pt, min_a=min_a, max_a=max_a)
    assert out_small.shape == (B, M, 3)
    assert jnp.allclose(out_small, ref_small, atol=1e-5, rtol=1e-5)

    # --- 2) Larger shape, f32: packed rows with padded tail (N = 2100). ---
    B2, M2 = 3, 700
    x_big = jax.random.normal(k_x2, (B2, M2, D), dtype=jnp.float32)
    out_big = jax.block_until_ready(run(x_big, w_pt.T, b_pt))
    ref_big = scale_from_embedding_ref(x_big, w_pt, b_pt, min_a=min_a, max_a=max_a)
    assert out_big.shape == (B2, M2, 3)
    assert jnp.allclose(out_big, ref_big, atol=1e-5, rtol=1e-5)

    # --- 3) bf16 activations/weights (halved HBM traffic), f32 accumulate. ---
    # (In production the producer should already write bf16 to HBM; the cast
    #  here is only for the correctness check.)
    out_bf16 = jax.block_until_ready(
        run(x_big.astype(jnp.bfloat16), w_pt.T.astype(jnp.bfloat16), b_pt))
    assert out_bf16.dtype == jnp.float32
    assert jnp.allclose(out_bf16, ref_big, atol=1e-2, rtol=1e-2)

    print("KERNEL_OK")
</pallas_src>

<mosaic_0001>
module attributes {stable_mosaic.version = 11 : i64} {
  func.func @_scale_kernel(%arg0: i32, %arg1: memref<8x128xf32, #tpu.memory_space<vmem>>, %arg2: memref<128x12xf32, #tpu.memory_space<vmem>>, %arg3: memref<1x12xf32, #tpu.memory_space<vmem>>, %arg4: memref<8x12xf32, #tpu.memory_space<vmem>>) attributes {dimension_semantics = [#tpu.dimension_semantics<parallel>], iteration_bounds = array<i64: 1>, scalar_prefetch = 0 : i64, scratch_operands = 0 : i64, tpu.core_type = #tpu.core_type<tc>, window_params = [{transform_indices = @transform_0, window_bounds = array<i64: 8, 128>}, {pipeline_mode = #tpu.pipeline_mode<synchronous>, transform_indices = @transform_1, window_bounds = array<i64: 128, 12>}, {pipeline_mode = #tpu.pipeline_mode<synchronous>, transform_indices = @transform_2, window_bounds = array<i64: 1, 12>}, {transform_indices = @transform_3, window_bounds = array<i64: 8, 12>}]} {
    %c0 = arith.constant 0 : index
    %c0_0 = arith.constant 0 : index
    %0 = vector.load %arg1[%c0, %c0_0] : memref<8x128xf32, #tpu.memory_space<vmem>>, vector<8x128xf32>
    %c0_1 = arith.constant 0 : index
    %c0_2 = arith.constant 0 : index
    %1 = vector.load %arg2[%c0_1, %c0_2] : memref<128x12xf32, #tpu.memory_space<vmem>>, vector<128x12xf32>
    %cst = arith.constant dense<0.000000e+00> : vector<8x12xf32>
    %2 = tpu.matmul %0, %1, %cst {dimension_numbers = #tpu.dot_dimension_numbers<[1], [0], [0], [1], [0, 0, 1, 1], [], []>} : vector<8x128xf32>, vector<128x12xf32>, vector<8x12xf32> -> vector<8x12xf32>
    %c0_3 = arith.constant 0 : index
    %c0_4 = arith.constant 0 : index
    %3 = vector.load %arg3[%c0_3, %c0_4] : memref<1x12xf32, #tpu.memory_space<vmem>>, vector<1x12xf32>
    %4 = vector.broadcast %3 : vector<1x12xf32> to vector<8x12xf32>
    %5 = arith.addf %2, %4 : vector<8x12xf32>
    %6 = arith.negf %5 : vector<8x12xf32>
    %7 = math.exp %6 : vector<8x12xf32>
    %cst_5 = arith.constant 1.000000e+00 : f32
    %8 = vector.broadcast %cst_5 : f32 to vector<8x12xf32>
    %9 = arith.addf %8, %7 : vector<8x12xf32>
    %10 = arith.divf %8, %9 : vector<8x12xf32>
    %cst_6 = arith.constant 5.000000e-01 : f32
    %11 = vector.broadcast %cst_6 : f32 to vector<8x12xf32>
    %12 = arith.mulf %10, %11 : vector<8x12xf32>
    %cst_7 = arith.constant 5.000000e-03 : f32
    %13 = vector.broadcast %cst_7 : f32 to vector<8x12xf32>
    %14 = arith.addf %12, %13 : vector<8x12xf32>
    %c0_8 = arith.constant 0 : index
    %c0_9 = arith.constant 0 : index
    %15 = vector.load %arg4[%c0_8, %c0_9] : memref<8x12xf32, #tpu.memory_space<vmem>>, vector<8x12xf32>
    tpu.vector_store %arg4[%c0_8, %c0_9], %14 {strides = array<i32>} : memref<8x12xf32, #tpu.memory_space<vmem>>, vector<8x12xf32>,
    return
  }
  func.func @transform_0(%arg0: i32) -> (i32, i32) {
    %c0_i32 = arith.constant 0 : i32
    %c0_i32_0 = arith.constant 0 : i32
    return %arg0, %c0_i32 : i32, i32
  }
  func.func @transform_1(%arg0: i32) -> (i32, i32) {
    %c0_i32 = arith.constant 0 : i32
    %c0_i32_0 = arith.constant 0 : i32
    %c0_i32_1 = arith.constant 0 : i32
    return %c0_i32, %c0_i32_0 : i32, i32
  }
  func.func @transform_2(%arg0: i32) -> (i32, i32) {
    %c0_i32 = arith.constant 0 : i32
    %c0_i32_0 = arith.constant 0 : i32
    %c0_i32_1 = arith.constant 0 : i32
    return %c0_i32, %c0_i32_0 : i32, i32
  }
  func.func @transform_3(%arg0: i32) -> (i32, i32) {
    %c0_i32 = arith.constant 0 : i32
    %c0_i32_0 = arith.constant 0 : i32
    return %arg0, %c0_i32 : i32, i32
  }
}

</mosaic_0001>

<llo_original>
// kernel: tpu_custom_call.1
$region0: #{tpu_custom_call.1}
  #allocation0 [shape = 'u32[]', space=smem, size = 0x4, offset = 0x4, fixed_abs, tag = 'smem constant byte address 0x4 - core index']
  #allocation1 [shape = 'u32[72,128]{1,0:T(1,128)}', space=vmem, size = 0x9000, scoped, tag = 'internal scratch']
  %s0 = inlined_call_operand.vmem [shape: f32[8,128], index: 0, kind: input, shape index: {}]
  %s1 = inlined_call_operand.vmem [shape: f32[128,12], index: 1, kind: input, shape index: {}]
  %s2 = inlined_call_operand.vmem [shape: f32[1,12], index: 2, kind: input, shape index: {}]
  %s3 = inlined_call_operand.hbm [shape: f32[8,12], index: 3, kind: output, shape index: {}]
  %s4 = sld [smem:[#allocation0]]
  $region22: #{tpu_custom_call.1} parent=0
    _
  %s6 = ssub.s32 1, %s4
  %s7 = scalar_select 0, %s6, %s4
  $region1: #{tpu_custom_call.1} parent=0
    #allocation2 [shape = 'u8[4096]{0}', space=vmem, size = 0x1000, scoped, tag = 'output window, operand 0, single buffered']
    #allocation3 [shape = 's32[1]{0}', space=sflag, size = 0x4, scoped, tag = 'scoped memory for tpu_custom_call.1']
    %8 = vsyncpa [#allocation3], 0
    // Predicated region
    $region2: #{tpu_custom_call.1} parent=1 // pred_check
      _
    $region3: #{tpu_custom_call.1} parent=1 // pred_check_branch
      %10 = sbr.rel (0) target = $region5
    $region4: #{tpu_custom_call.1} parent=1 // pred_region
      _
    $region5: #{tpu_custom_call.1} parent=1 // pred_fallthru
      _
    // Predicated region
    $region6: #{tpu_custom_call.1} parent=1 // pred_check
      _
    $region7: #{tpu_custom_call.1} parent=1 // pred_check_branch
      %12 = sbr.rel (0) target = $region9
    $region8: #{tpu_custom_call.1} parent=1 // pred_region
      _
    $region9: #{tpu_custom_call.1} parent=1 // pred_fallthru
      _
    // Predicated region
    $region10: #{tpu_custom_call.1} parent=1 // pred_check
      _
    $region11: #{tpu_custom_call.1} parent=1 // pred_check_branch
      %14 = sbr.rel (0) target = $region13
    $region12: #{tpu_custom_call.1} parent=1 // pred_region
      _
    $region13: #{tpu_custom_call.1} parent=1 // pred_fallthru
      _
    %v15 = vld [vmem:[%s0] sm:$0xff]
    %v16 = vld [vmem:[%s1] sm:$0xff]
    %v17 = vld [vmem:[%s1 + $0x8] sm:$0xff]
    %v18 = vld [vmem:[%s1 + $0x10] sm:$0xff]
    %v19 = vld [vmem:[%s1 + $0x18] sm:$0xff]
    %v20 = vld [vmem:[%s1 + $0x20] sm:$0xff]
    %v21 = vld [vmem:[%s1 + $0x28] sm:$0xff]
    %v22 = vld [vmem:[%s1 + $0x30] sm:$0xff]
    %v23 = vld [vmem:[%s1 + $0x38] sm:$0xff]
    %v24 = vld [vmem:[%s1 + $0x40] sm:$0xff]
    %v25 = vld [vmem:[%s1 + $0x48] sm:$0xff]
    %v26 = vld [vmem:[%s1 + $0x50] sm:$0xff]
    %v27 = vld [vmem:[%s1 + $0x58] sm:$0xff]
    %v28 = vld [vmem:[%s1 + $0x60] sm:$0xff]
    %v29 = vld [vmem:[%s1 + $0x68] sm:$0xff]
    %v30 = vld [vmem:[%s1 + $0x70] sm:$0xff]
    %v31 = vld [vmem:[%s1 + $0x78] sm:$0xff]
    %v32 = vld [vmem:[%s2] sm:$0x1]
    %v34 = vperm.slane %v32, 0
    %36 = vmatpush.msra.mxu0 %v31
    %37 = vmatpush.msra.mxu0 %v30
    %38 = vmatpush.msra.mxu0 %v29
    %39 = vmatpush.msra.mxu0 %v28
    %40 = vmatpush.msra.mxu0 %v27
    %41 = vmatpush.msra.mxu0 %v26
    %42 = vmatpush.msra.mxu0 %v25
    %43 = vmatpush.msra.mxu0 %v24
    %44 = vmatpush.msra.mxu0 %v23
    %45 = vmatpush.msra.mxu0 %v22
    %46 = vmatpush.msra.mxu0 %v21
    %47 = vmatpush.msra.mxu0 %v20
    %48 = vmatpush.msra.mxu0 %v19
    %49 = vmatpush.msra.mxu0 %v18
    %50 = vmatpush.msra.mxu0 %v17
    %51 = vmatpush.msra.mxu0 %v16
    %52 = vmatmul.f32.gmra.mxu0 %v15
    %v53 = vpop.f32.mrf.mxu0
    %v54 = vadd.f32 %v34, %v53
    %55 = vdwg.mxu0
    %v56 = vxor.u32 %v54, 2147483648
    %v57 = vmul.f32 %v56, 1.442695
    %v58 = vpow.pop %v57
    %v59 = vadd.f32 %v58, 1.0
    %v60 = vrcp.pop %v59
    %v61 = vmul.f32 %v59, %v60
    %v62 = vsub.f32 1.0, %v61
    %v63 = vmul.f32 %v60, %v62
    %v64 = vadd.f32 %v60, %v63
    %vm65 = vweird.f32 %v59
    %vm66 = vweird.f32 %v60
    %vm67 = vmor %vm65, %vm66
    %v68 = vsel %vm67, %v60, %v64
    %v69 = vand.u32 2147483647, %v59
    %vm70 = vcmp.eq.f32.partialorder %v69, 8.507059e+37
    %v71 = vand.u32 %v59, 2147483648
    %v72 = vor.u32 1.1754944e-38, %v71
    %v73 = vsel %vm70, %v72, %v68
    %v74 = vmul.f32 1.0, %v73
    %v75 = vmul.f32 %v74, 0.5
    %v76 = vadd.f32 %v75, 0.005
    %vm77 = vcmask 97280
    %78 = vst.msk [vmem:[#allocation2] sm:$0xff] %vm77, %v76
    // Predicated region
    $region14: #{tpu_custom_call.1} parent=1 // pred_check
      _
    $region15: #{tpu_custom_call.1} parent=1 // pred_check_branch
      %80 = sbr.rel (0) target = $region17
    $region16: #{tpu_custom_call.1} parent=1 // pred_region
      %82 = vsyncadd [#allocation3], 0
      %s84 = sshll.u32 [#allocation2], 4
      %s85 = int_to_ptr.vmem [resolvable:$true] %s84
      %s86 = sshll.u32 %s3, 4
      %s87 = int_to_ptr.hbm [resolvable:$true] %s86
      %89 = dma.vmem_to_hbm [thread:$0]  %s85, 128, %s87, [#allocation3]
    $region17: #{tpu_custom_call.1} parent=1 // pred_fallthru
      _
    // Predicated region
    $region18: #{tpu_custom_call.1} parent=1 // pred_check
      _
    $region19: #{tpu_custom_call.1} parent=1 // pred_check_branch
      %91 = sbr.rel (0) target = $region21
    $region20: #{tpu_custom_call.1} parent=1 // pred_region
      %93 = dma.done [#allocation3], 128
    $region21: #{tpu_custom_call.1} parent=1 // pred_fallthru
      _
    %94 = vsyncpa [#allocation3], 1

</llo_original>
